<compile_context>
chip_gen: v7x
topology: tpu7x:2x2x1
jax: 0.10.0
libtpu: 0.0.40
codegen_flags: <defaults>
</compile_context>

<pallas_src>
import functools

import jax
import jax.numpy as jnp
import numpy as np
from jax import lax
from jax.experimental import pallas as pl
from jax.experimental.pallas import tpu as pltpu


def _focal_kernel(logit_ref, target_ref, alpha_ref, out_ref, *,
                  num_classes, gamma, smooth, tile_rows, total_rows,
                  s_inner, num_blocks, need_mask):
    si = pl.program_id(2)

    # Output block is resident across the inner spatial axis -> accumulator.
    @pl.when(si == 0)
    def _init():
        out_ref[...] = jnp.zeros_like(out_ref)

    # C class slabs, each (tile_rows, 128); class reductions are pure VPU.
    xs = [logit_ref[0, c].astype(jnp.float32) for c in range(num_classes)]
    t = target_ref[0]                                   # (tile_rows, 128) int

    m = xs[0]
    for c in range(1, num_classes):
        m = jnp.maximum(m, xs[c])

    denom = jnp.zeros_like(m)
    e_t = jnp.zeros_like(m)
    alpha_t = jnp.zeros_like(m)
    for c in range(num_classes):
        e_c = jnp.exp(xs[c] - m)                        # one EUP op per class
        denom = denom + e_c
        hit = t == c
        e_t = jnp.where(hit, e_c, e_t)                  # softmax numerator @ target
        alpha_t = jnp.where(hit, alpha_ref[c], alpha_t)  # alpha as SMEM scalars

    # prob.gather(target) + smooth, exactly like the PyTorch module.
    pt = e_t / denom + smooth
    logpt = jnp.log(pt)
    one_minus_pt = 1.0 - pt
    if float(gamma).is_integer():
        mod = lax.integer_pow(one_minus_pt, int(gamma))  # VPU multiply chain
    else:
        # Parity with torch.pow (NaN possible if pt > 1 because of +smooth).
        mod = jnp.power(one_minus_pt, jnp.float32(gamma))

    # Lane-padded positions have target == -1 -> alpha_t == 0 -> loss == 0.
    loss = -alpha_t * mod * logpt                        # (tile_rows, 128)

    if need_mask:
        # Only the globally last spatial block overhangs the row count; keep
        # the select (NaN-safe) and gate it so interior blocks stay mask-free.
        rb = pl.program_id(1) * s_inner + si

        @pl.when(rb == num_blocks - 1)
        def _tail():
            row = lax.broadcasted_iota(jnp.int32, loss.shape, 0)
            valid = rb * tile_rows + row < total_rows
            out_ref[...] += jnp.where(valid, loss, 0.0)[None, None]

        @pl.when(rb != num_blocks - 1)
        def _body():
            out_ref[...] += loss[None, None]
    else:
        out_ref[...] += loss[None, None]


def focal_loss(logit_nchw, target_nhw, alpha, *, gamma=2, smooth=1e-4):
    """logit_nchw: (N, C, H, W) float; target_nhw: (N, H, W) int; alpha: (C,)."""
    N, C, H, W = logit_nchw.shape
    HW = H * W
    M = N * HW

    logit_itemsize = logit_nchw.dtype.itemsize
    # Keep narrow signed-integer targets as-is (less HBM traffic); only cast
    # non-signed-int inputs to int32.
    if jnp.issubdtype(target_nhw.dtype, jnp.signedinteger):
        tgt = target_nhw
    else:
        tgt = target_nhw.astype(jnp.int32)
    tgt_itemsize = tgt.dtype.itemsize

    # Lane-pad HW up to a multiple of 128 (copy only when actually needed).
    R = -(-HW // 128)
    HW_pad = R * 128
    logit3 = logit_nchw.reshape(N, C, HW)
    tgt2 = tgt.reshape(N, HW)
    if HW_pad != HW:
        logit3 = jnp.pad(logit3, ((0, 0), (0, 0), (0, HW_pad - HW)))
        tgt2 = jnp.pad(tgt2, ((0, 0), (0, HW_pad - HW)), constant_values=-1)
    logit4 = logit3.reshape(N, C, R, 128)
    tgt3 = tgt2.reshape(N, R, 128)
    alpha1 = jnp.asarray(alpha, jnp.float32).reshape(C)

    # --- tile sizing from actual VMEM capacity (v7x 64 MiB vs v5e/v6e 128) ---
    vmem_cap = 64 * 1024 * 1024
    try:
        vmem_cap = int(pltpu.get_tpu_info().vmem_capacity_bytes)
    except Exception:
        pass
    # VMEM bytes per spatial row (128 lanes) of one tile: double-buffered
    # logits + target blocks, resident f32 output, ~(C+12) f32 working slabs.
    per_row = 128 * (2 * C * logit_itemsize + 2 * tgt_itemsize + 2 * 4
                     + (C + 12) * 4)
    budget_rows = max(8, (vmem_cap // 2 // per_row) // 8 * 8)

    nb = 1 if R <= budget_rows else -(-R // budget_rows)
    if N == 1 and R >= 16 and nb % 2:
        nb += 1                      # give v7x's two TensorCores a spatial split
    if nb == 1:
        tile_rows = R                # single full block (may be < 8 rows: OK)
    else:
        tile_rows = (-(-R // nb) + 7) // 8 * 8
    num_blocks = -(-R // tile_rows)
    s_outer = 2 if (N == 1 and num_blocks >= 2 and num_blocks % 2 == 0) else 1
    s_inner = num_blocks // s_outer
    need_mask = (R % tile_rows) != 0

    vmem_limit = int(min(vmem_cap,
                         max(tile_rows * per_row + (2 << 20), 32 * 1024 * 1024)))

    kernel = functools.partial(
        _focal_kernel, num_classes=C, gamma=gamma, smooth=float(smooth),
        tile_rows=tile_rows, total_rows=R, s_inner=s_inner,
        num_blocks=num_blocks, need_mask=need_mask)

    lanes = N * R * 128
    cost = pl.CostEstimate(
        flops=(6 * C + 12) * lanes,
        transcendentals=(C + 1) * lanes,
        bytes_accessed=(C * lanes * logit_itemsize + lanes * tgt_itemsize
                        + N * s_outer * tile_rows * 128 * 4 + C * 4),
    )

    partials = pl.pallas_call(
        kernel,
        out_shape=jax.ShapeDtypeStruct((N, s_outer, tile_rows, 128), jnp.float32),
        grid_spec=pltpu.PrefetchScalarGridSpec(
            num_scalar_prefetch=0,
            grid=(N, s_outer, s_inner),
            in_specs=[
                pl.BlockSpec((1, C, tile_rows, 128),
                             lambda n, so, si: (n, 0, so * s_inner + si, 0)),
                pl.BlockSpec((1, tile_rows, 128),
                             lambda n, so, si: (n, so * s_inner + si, 0)),
                pl.BlockSpec(memory_space=pltpu.MemorySpace.SMEM),
            ],
            out_specs=pl.BlockSpec((1, 1, tile_rows, 128),
                                   lambda n, so, si: (n, so, 0, 0)),
        ),
        compiler_params=pltpu.CompilerParams(
            dimension_semantics=("parallel", "parallel", "arbitrary"),
            vmem_limit_bytes=vmem_limit),
        cost_estimate=cost,
    )(logit4, tgt3, alpha1)

    # Tiny final reduction in plain XLA; mean over the true element count.
    return jnp.sum(partials) / jnp.float32(M)
    # TODO(synk): only reduction='mean' (the module default) is fused here;
    # 'none'/'sum' would skip/replace this final mean.


def focal_loss_reference(logit_nchw, target_nhw, alpha, gamma=2, smooth=1e-4):
    """Pure-JAX reference mirroring the PyTorch module (reduction='mean')."""
    N, C, H, W = logit_nchw.shape
    prob = jax.nn.softmax(logit_nchw.astype(jnp.float32), axis=1)
    prob = jnp.transpose(prob, (0, 2, 3, 1)).reshape(-1, C)
    tgt = target_nhw.reshape(-1).astype(jnp.int32)
    pt = jnp.take_along_axis(prob, tgt[:, None], axis=1)[:, 0] + smooth
    logpt = jnp.log(pt)
    aw = jnp.asarray(alpha, jnp.float32)[tgt]
    loss = -aw * jnp.power(1.0 - pt, gamma) * logpt
    return jnp.mean(loss)


if __name__ == "__main__":
    key = jax.random.PRNGKey(0)
    k1, k2, k3, k4 = jax.random.split(key, 4)

    # Primary case from the module spec: small NCHW segmentation-style input.
    N, C, H, W = 2, 4, 16, 16
    logit = jax.random.normal(k1, (N, C, H, W), dtype=jnp.float32)
    target = jax.random.randint(k2, (N, H, W), 0, C, dtype=jnp.int32)
    alpha = jnp.ones((C,), dtype=jnp.float32) - 0.5   # module default alpha
    gamma = 2

    out = jax.block_until_ready(focal_loss(logit, target, alpha, gamma=gamma))
    ref = jax.block_until_ready(
        focal_loss_reference(logit, target, alpha, gamma=gamma))
    assert np.allclose(np.asarray(out), np.asarray(ref), rtol=1e-4, atol=1e-5), \
        (out, ref)

    # Extra case exercising the N == 1 spatial split + gated tail mask path.
    logit2 = jax.random.normal(k3, (1, C, 48, 48), dtype=jnp.float32)
    target2 = jax.random.randint(k4, (1, 48, 48), 0, C, dtype=jnp.int32)
    out2 = jax.block_until_ready(focal_loss(logit2, target2, alpha, gamma=gamma))
    ref2 = jax.block_until_ready(
        focal_loss_reference(logit2, target2, alpha, gamma=gamma))
    assert np.allclose(np.asarray(out2), np.asarray(ref2), rtol=1e-4, atol=1e-5), \
        (out2, ref2)

    print("KERNEL_OK")
</pallas_src>

<mosaic_0001>
module attributes {stable_mosaic.version = 11 : i64} {
  func.func @_focal_kernel(%arg0: i32, %arg1: i32, %arg2: i32, %arg3: memref<1x4x2x128xf32, #tpu.memory_space<vmem>>, %arg4: memref<1x2x128xi32, #tpu.memory_space<vmem>>, %arg5: memref<4xf32, #tpu.memory_space<smem>>, %arg6: memref<1x1x2x128xf32, #tpu.memory_space<vmem>>) attributes {dimension_semantics = [#tpu.dimension_semantics<parallel>, #tpu.dimension_semantics<parallel>, #tpu.dimension_semantics<arbitrary>], iteration_bounds = array<i64: 2, 1, 1>, scalar_prefetch = 0 : i64, scratch_operands = 0 : i64, tpu.core_type = #tpu.core_type<tc>, window_params = [{transform_indices = @transform_0, window_bounds = array<i64: 1, 4, 2, 128>}, {transform_indices = @transform_1, window_bounds = array<i64: 1, 2, 128>}, {transform_indices = @transform_2, window_bounds = array<i64: 4>}, {transform_indices = @transform_3, window_bounds = array<i64: 1, 1, 2, 128>}]} {
    %c0_i32 = arith.constant 0 : i32
    %0 = arith.cmpi eq, %arg2, %c0_i32 : i32
    %1 = arith.extui %0 : i1 to i32
    %c0_i32_0 = arith.constant 0 : i32
    %2 = arith.cmpi ne, %1, %c0_i32_0 : i32
    scf.if %2 {
      %cst_34 = arith.constant 0.000000e+00 : f32
      %70 = vector.broadcast %cst_34 : f32 to vector<1x1x2x128xf32>
      %c0_35 = arith.constant 0 : index
      %c0_36 = arith.constant 0 : index
      %c0_37 = arith.constant 0 : index
      %c0_38 = arith.constant 0 : index
      %71 = vector.load %arg6[%c0_35, %c0_36, %c0_37, %c0_38] : memref<1x1x2x128xf32, #tpu.memory_space<vmem>>, vector<1x1x2x128xf32>
      tpu.vector_store %arg6[%c0_35, %c0_36, %c0_37, %c0_38], %70 {strides = array<i32>} : memref<1x1x2x128xf32, #tpu.memory_space<vmem>>, vector<1x1x2x128xf32>,
    } else {
    }
    %c0 = arith.constant 0 : index
    %c0_1 = arith.constant 0 : index
    %c0_2 = arith.constant 0 : index
    %c0_3 = arith.constant 0 : index
    %3 = vector.load %arg3[%c0, %c0_1, %c0_2, %c0_3] : memref<1x4x2x128xf32, #tpu.memory_space<vmem>>, vector<1x1x2x128xf32>
    %4 = vector.shape_cast %3 : vector<1x1x2x128xf32> to vector<2x128xf32>
    %c0_4 = arith.constant 0 : index
    %c1 = arith.constant 1 : index
    %c0_5 = arith.constant 0 : index
    %c0_6 = arith.constant 0 : index
    %5 = vector.load %arg3[%c0_4, %c1, %c0_5, %c0_6] : memref<1x4x2x128xf32, #tpu.memory_space<vmem>>, vector<1x1x2x128xf32>
    %6 = vector.shape_cast %5 : vector<1x1x2x128xf32> to vector<2x128xf32>
    %c0_7 = arith.constant 0 : index
    %c2 = arith.constant 2 : index
    %c0_8 = arith.constant 0 : index
    %c0_9 = arith.constant 0 : index
    %7 = vector.load %arg3[%c0_7, %c2, %c0_8, %c0_9] : memref<1x4x2x128xf32, #tpu.memory_space<vmem>>, vector<1x1x2x128xf32>
    %8 = vector.shape_cast %7 : vector<1x1x2x128xf32> to vector<2x128xf32>
    %c0_10 = arith.constant 0 : index
    %c3 = arith.constant 3 : index
    %c0_11 = arith.constant 0 : index
    %c0_12 = arith.constant 0 : index
    %9 = vector.load %arg3[%c0_10, %c3, %c0_11, %c0_12] : memref<1x4x2x128xf32, #tpu.memory_space<vmem>>, vector<1x1x2x128xf32>
    %10 = vector.shape_cast %9 : vector<1x1x2x128xf32> to vector<2x128xf32>
    %c0_13 = arith.constant 0 : index
    %c0_14 = arith.constant 0 : index
    %c0_15 = arith.constant 0 : index
    %11 = vector.load %arg4[%c0_13, %c0_14, %c0_15] : memref<1x2x128xi32, #tpu.memory_space<vmem>>, vector<1x2x128xi32>
    %12 = vector.shape_cast %11 : vector<1x2x128xi32> to vector<2x128xi32>
    %13 = arith.maximumf %4, %6 : vector<2x128xf32>
    %14 = arith.maximumf %13, %8 : vector<2x128xf32>
    %15 = arith.maximumf %14, %10 : vector<2x128xf32>
    %cst = arith.constant 0.000000e+00 : f32
    %16 = vector.broadcast %cst : f32 to vector<2x128xf32>
    %cst_16 = arith.constant 0.000000e+00 : f32
    %17 = vector.broadcast %cst_16 : f32 to vector<2x128xf32>
    %cst_17 = arith.constant 0.000000e+00 : f32
    %18 = vector.broadcast %cst_17 : f32 to vector<2x128xf32>
    %19 = arith.subf %4, %15 : vector<2x128xf32>
    %20 = math.exp %19 : vector<2x128xf32>
    %21 = arith.addf %16, %20 : vector<2x128xf32>
    %c0_i32_18 = arith.constant 0 : i32
    %22 = vector.broadcast %c0_i32_18 : i32 to vector<2x128xi32>
    %23 = arith.cmpi eq, %12, %22 : vector<2x128xi32>
    %24 = arith.select %23, %20, %17 : vector<2x128xi1>, vector<2x128xf32>
    %c0_19 = arith.constant 0 : index
    %25 = memref.load %arg5[%c0_19] : memref<4xf32, #tpu.memory_space<smem>>
    %26 = vector.broadcast %25 : f32 to vector<2x128xf32>
    %27 = arith.select %23, %26, %18 : vector<2x128xi1>, vector<2x128xf32>
    %28 = arith.subf %6, %15 : vector<2x128xf32>
    %29 = math.exp %28 : vector<2x128xf32>
    %30 = arith.addf %21, %29 : vector<2x128xf32>
    %c1_i32 = arith.constant 1 : i32
    %31 = vector.broadcast %c1_i32 : i32 to vector<2x128xi32>
    %32 = arith.cmpi eq, %12, %31 : vector<2x128xi32>
    %33 = arith.select %32, %29, %24 : vector<2x128xi1>, vector<2x128xf32>
    %c1_20 = arith.constant 1 : index
    %34 = memref.load %arg5[%c1_20] : memref<4xf32, #tpu.memory_space<smem>>
    %35 = vector.broadcast %34 : f32 to vector<2x128xf32>
    %36 = arith.select %32, %35, %27 : vector<2x128xi1>, vector<2x128xf32>
    %37 = arith.subf %8, %15 : vector<2x128xf32>
    %38 = math.exp %37 : vector<2x128xf32>
    %39 = arith.addf %30, %38 : vector<2x128xf32>
    %c2_i32 = arith.constant 2 : i32
    %40 = vector.broadcast %c2_i32 : i32 to vector<2x128xi32>
    %41 = arith.cmpi eq, %12, %40 : vector<2x128xi32>
    %42 = arith.select %41, %38, %33 : vector<2x128xi1>, vector<2x128xf32>
    %c2_21 = arith.constant 2 : index
    %43 = memref.load %arg5[%c2_21] : memref<4xf32, #tpu.memory_space<smem>>
    %44 = vector.broadcast %43 : f32 to vector<2x128xf32>
    %45 = arith.select %41, %44, %36 : vector<2x128xi1>, vector<2x128xf32>
    %46 = arith.subf %10, %15 : vector<2x128xf32>
    %47 = math.exp %46 : vector<2x128xf32>
    %48 = arith.addf %39, %47 : vector<2x128xf32>
    %c3_i32 = arith.constant 3 : i32
    %49 = vector.broadcast %c3_i32 : i32 to vector<2x128xi32>
    %50 = arith.cmpi eq, %12, %49 : vector<2x128xi32>
    %51 = arith.select %50, %47, %42 : vector<2x128xi1>, vector<2x128xf32>
    %c3_22 = arith.constant 3 : index
    %52 = memref.load %arg5[%c3_22] : memref<4xf32, #tpu.memory_space<smem>>
    %53 = vector.broadcast %52 : f32 to vector<2x128xf32>
    %54 = arith.select %50, %53, %45 : vector<2x128xi1>, vector<2x128xf32>
    %55 = arith.divf %51, %48 : vector<2x128xf32>
    %cst_23 = arith.constant 9.99999974E-5 : f32
    %56 = vector.broadcast %cst_23 : f32 to vector<2x128xf32>
    %57 = arith.addf %55, %56 : vector<2x128xf32>
    %58 = math.log %57 : vector<2x128xf32>
    %cst_24 = arith.constant 1.000000e+00 : f32
    %59 = vector.broadcast %cst_24 : f32 to vector<2x128xf32>
    %60 = arith.subf %59, %57 : vector<2x128xf32>
    %61 = arith.mulf %60, %60 : vector<2x128xf32>
    %cst_25 = arith.constant 0.000000e+00 : f32
    %62 = vector.broadcast %cst_25 : f32 to vector<2x128xf32>
    %63 = arith.subf %62, %54 : vector<2x128xf32>
    %64 = arith.mulf %63, %61 : vector<2x128xf32>
    %65 = arith.mulf %64, %58 : vector<2x128xf32>
    %c0_26 = arith.constant 0 : index
    %c0_27 = arith.constant 0 : index
    %c0_28 = arith.constant 0 : index
    %c0_29 = arith.constant 0 : index
    %66 = vector.load %arg6[%c0_26, %c0_27, %c0_28, %c0_29] : memref<1x1x2x128xf32, #tpu.memory_space<vmem>>, vector<1x1x2x128xf32>
    %67 = vector.shape_cast %65 : vector<2x128xf32> to vector<1x1x2x128xf32>
    %68 = arith.addf %66, %67 : vector<1x1x2x128xf32>
    %c0_30 = arith.constant 0 : index
    %c0_31 = arith.constant 0 : index
    %c0_32 = arith.constant 0 : index
    %c0_33 = arith.constant 0 : index
    %69 = vector.load %arg6[%c0_30, %c0_31, %c0_32, %c0_33] : memref<1x1x2x128xf32, #tpu.memory_space<vmem>>, vector<1x1x2x128xf32>
    tpu.vector_store %arg6[%c0_30, %c0_31, %c0_32, %c0_33], %68 {strides = array<i32>} : memref<1x1x2x128xf32, #tpu.memory_space<vmem>>, vector<1x1x2x128xf32>,
    return
  }
  func.func @transform_0(%arg0: i32, %arg1: i32, %arg2: i32) -> (i32, i32, i32, i32) {
    %c1_i32 = arith.constant 1 : i32
    %0 = arith.muli %arg1, %c1_i32 : i32
    %1 = arith.addi %0, %arg2 : i32
    %c0_i32 = arith.constant 0 : i32
    %c0_i32_0 = arith.constant 0 : i32
    %c0_i32_1 = arith.constant 0 : i32
    return %arg0, %c0_i32, %1, %c0_i32_0 : i32, i32, i32, i32
  }
  func.func @transform_1(%arg0: i32, %arg1: i32, %arg2: i32) -> (i32, i32, i32) {
    %c1_i32 = arith.constant 1 : i32
    %0 = arith.muli %arg1, %c1_i32 : i32
    %1 = arith.addi %0, %arg2 : i32
    %c0_i32 = arith.constant 0 : i32
    %c0_i32_0 = arith.constant 0 : i32
    return %arg0, %1, %c0_i32 : i32, i32, i32
  }
  func.func @transform_2(%arg0: i32, %arg1: i32, %arg2: i32) -> i32 {
    %c0_i32 = arith.constant 0 : i32
    %c0_i32_0 = arith.constant 0 : i32
    return %c0_i32 : i32
  }
  func.func @transform_3(%arg0: i32, %arg1: i32, %arg2: i32) -> (i32, i32, i32, i32) {
    %c0_i32 = arith.constant 0 : i32
    %c0_i32_0 = arith.constant 0 : i32
    %c0_i32_1 = arith.constant 0 : i32
    return %arg0, %arg1, %c0_i32, %c0_i32_0 : i32, i32, i32, i32
  }
}

</mosaic_0001>

<llo_original>
// kernel: tpu_custom_call.1
$region0: #{tpu_custom_call.1}
  #allocation0 [shape = 'u32[]', space=smem, size = 0x4, offset = 0x4, fixed_abs, tag = 'smem constant byte address 0x4 - core index']
  #allocation1 [shape = 'u32[144,128]{1,0:T(1,128)}', space=vmem, size = 0x12000, scoped, tag = 'internal scratch']
  %s0 = inlined_call_operand.hbm [shape: f32[2,4,2,128], index: 0, kind: input, shape index: {}]
  %s1 = inlined_call_operand.hbm [shape: s32[2,2,128], index: 1, kind: input, shape index: {}]
  %s2 = inlined_call_operand.vmem [shape: f32[4], index: 2, kind: input, shape index: {}]
  %s3 = inlined_call_operand.hbm [shape: f32[2,1,2,128], index: 3, kind: output, shape index: {}]
  %s4 = sld [smem:[#allocation0]]
  $region61: #{tpu_custom_call.1} parent=0
    _
  %s6 = ssub.s32 1, %s4
  %s7 = scalar_select 0, %s6, %s4
  $region1: #{tpu_custom_call.1} parent=0
    #allocation2 [shape = 'u8[8192]{0}', space=vmem, size = 0x2000, scoped, tag = 'input window, operand 0']
    #allocation3 [shape = 's32[2]{0}', space=sflag, size = 0x8, scoped, tag = 'scoped memory for tpu_custom_call.1']
    #allocation4 [shape = 's32[2]{0}', space=sflag, size = 0x8, scoped, tag = 'scoped memory for tpu_custom_call.1']
    #allocation5 [shape = 's32[2]{0}', space=sflag, size = 0x8, scoped, tag = 'scoped memory for tpu_custom_call.1']
    #allocation6 [shape = 'u8[2048]{0}', space=vmem, size = 0x800, scoped, tag = 'input window, operand 1']
    #allocation7 [shape = 's32[2]{0}', space=sflag, size = 0x8, scoped, tag = 'scoped memory for tpu_custom_call.1']
    #allocation8 [shape = 'u8[512]{0}', space=smem, size = 0x200, scoped, tag = 'input window, operand 2, single buffered']
    #allocation9 [shape = 'u8[2048]{0}', space=vmem, size = 0x800, scoped, tag = 'output window, operand 0']
    %8 = vsyncpa [#allocation3], 0
    %s9 = scalar_lea.sflag [#allocation3], 1
    %10 = vsyncpa %s9, 0
    %11 = vsyncpa [#allocation7], 0
    %s12 = scalar_lea.sflag [#allocation7], 1
    %13 = vsyncpa %s12, 0
    %14 = vsyncpa [#allocation5], 0
    %15 = vsyncpa [#allocation4], 0
    %s16 = scalar_lea.sflag [#allocation4], 1
    %17 = vsyncpa %s16, 0
    loop: start=0, step=1, limit=4
    $region2: #{tpu_custom_call.1} parent=1 // loop_pre_header
      _
    $region3: #{tpu_custom_call.1} parent=1 // loop_header
      %s19 = sphi 0, %s23
      %p20 = scmp.ge.s32.totalorder %s19, 4
      %s26 = sphi 0, %s45
      %s27 = sphi 0, %s41
      %s28 = sphi 0, %s37
      %s29 = sphi 0, %s26
      %s30 = sphi 0, %s27
      %s31 = sphi 0, %s28
      %s32 = sphi 0, %s29
      %s33 = sphi 0, %s30
      %s34 = sphi 0, %s31
      %s52 = sphi 0, %s54
      %s55 = sphi 0, %s52
      %s56 = sphi 0, %s55
      %s72 = sphi 0, %s56
      %s82 = sphi 0, %s84
      %s85 = sphi 0, %s82
      %s86 = sphi 0, %s85
      %s102 = sphi 0, %s86
      %s106 = sphi 0, %s106
      %s108 = sphi 0, %s106
      %s109 = sphi 0, %s108
      %s123 = sphi 0, %s109
      %s131 = sphi 0, %s133
      %s134 = sphi 0, %s131
      %s135 = sphi 0, %s134
      %s151 = sphi 0, %s135
    $region4: #{tpu_custom_call.1} parent=1 // loop_header_branch
      %22 = sbr.rel (%p20) target = $region8
    $region5: #{tpu_custom_call.1} parent=1 // loop_body
      %s24 = ssub.s32 %s19, 1
      %s25 = ssub.s32 %s19, 2
      %s35 = sadd.s32 1, %s28
      %p36 = scmp.ge.s32.totalorder %s35, 1
      %s37 = scalar_select %p36, 0, %s35
      %s38 = sadd.s32 1, %s27
      %s39 = scalar_select %p36, %s38, %s27
      %p40 = scmp.ge.s32.totalorder %s39, 1
      %s41 = scalar_select %p40, 0, %s39
      %s42 = sadd.s32 1, %s26
      %s43 = scalar_select %p40, %s42, %s26
      %p44 = scmp.ge.s32.totalorder %s43, 2
      %s45 = scalar_select %p44, 0, %s43
      %s46 = sadd.s32 %s27, %s28
      %s47 = sadd.s32 %s41, %s37
      %s48 = ssub.s32 %s26, %s45
      %s49 = ssub.s32 %s46, %s47
      %s50 = sor.u32 %s48, %s49
      %p51 = scmp.eq.s32.totalorder %s50, 0
      %s53 = sadd.s32 %s52, 1
      %s54 = scalar_select %p51, %s52, %s53
      %p57 = pneg %p51
      %p58 = scmp.eq.s32.totalorder %s19, 1
      %p59 = por %p57, %p58
      %p60 = scmp.ne.s32.totalorder %s52, %s55
      %p61 = scmp.eq.s32.totalorder %s19, 0
      %p62 = por %p60, %p61
      %p63 = scmp.ne.s32.totalorder %s52, %s55
      %p64 = scmp.eq.s32.totalorder %s24, 1
      %p65 = por %p63, %p64
      %p66 = scmp.ne.s32.totalorder %s55, %s56
      %p67 = scmp.eq.s32.totalorder %s24, 0
      %p68 = por %p66, %p67
      %p69 = scmp.ne.s32.totalorder %s55, %s56
      %p70 = scmp.eq.s32.totalorder %s25, 1
      %p71 = por %p69, %p70
      %p73 = scmp.ne.s32.totalorder %s56, %s72
      %p74 = scmp.eq.s32.totalorder %s25, 0
      %p75 = por %p73, %p74
      %s76 = sadd.s32 %s27, %s28
      %s77 = sadd.s32 %s41, %s37
      %s78 = ssub.s32 %s26, %s45
      %s79 = ssub.s32 %s76, %s77
      %s80 = sor.u32 %s78, %s79
      %p81 = scmp.eq.s32.totalorder %s80, 0
      %s83 = sadd.s32 %s82, 1
      %s84 = scalar_select %p81, %s82, %s83
      %p87 = pneg %p81
      %p88 = scmp.eq.s32.totalorder %s19, 1
      %p89 = por %p87, %p88
      %p90 = scmp.ne.s32.totalorder %s82, %s85
      %p91 = scmp.eq.s32.totalorder %s19, 0
      %p92 = por %p90, %p91
      %p93 = scmp.ne.s32.totalorder %s82, %s85
      %p94 = scmp.eq.s32.totalorder %s24, 1
      %p95 = por %p93, %p94
      %p96 = scmp.ne.s32.totalorder %s85, %s86
      %p97 = scmp.eq.s32.totalorder %s24, 0
      %p98 = por %p96, %p97
      %p99 = scmp.ne.s32.totalorder %s85, %s86
      %p100 = scmp.eq.s32.totalorder %s25, 1
      %p101 = por %p99, %p100
      %p103 = scmp.ne.s32.totalorder %s86, %s102
      %p104 = scmp.eq.s32.totalorder %s25, 0
      %p105 = por %p103, %p104
      %s107 = sadd.s32 %s106, 1
      %p110 = scmp.eq.s32.totalorder %s19, 1
      %p111 = scmp.ne.s32.totalorder %s106, %s108
      %p112 = scmp.eq.s32.totalorder %s19, 0
      %p113 = por %p111, %p112
      %p114 = scmp.ne.s32.totalorder %s106, %s108
      %p115 = scmp.eq.s32.totalorder %s24, 1
      %p116 = por %p114, %p115
      %p117 = scmp.ne.s32.totalorder %s108, %s109
      %p118 = scmp.eq.s32.totalorder %s24, 0
      %p119 = por %p117, %p118
      %p120 = scmp.ne.s32.totalorder %s108, %s109
      %p121 = scmp.eq.s32.totalorder %s25, 1
      %p122 = por %p120, %p121
      %p124 = scmp.ne.s32.totalorder %s109, %s123
      %p125 = scmp.eq.s32.totalorder %s25, 0
      %p126 = por %p124, %p125
      %s127 = ssub.s32 %s26, %s45
      %s128 = ssub.s32 %s27, %s41
      %s129 = sor.u32 %s127, %s128
      %p130 = scmp.eq.s32.totalorder %s129, 0
      %s132 = sadd.s32 %s131, 1
      %s133 = scalar_select %p130, %s131, %s132
      %p136 = pneg %p130
      %p137 = scmp.eq.s32.totalorder %s19, 1
      %p138 = por %p136, %p137
      %p139 = scmp.ne.s32.totalorder %s131, %s134
      %p140 = scmp.eq.s32.totalorder %s19, 0
      %p141 = por %p139, %p140
      %p142 = scmp.ne.s32.totalorder %s131, %s134
      %p143 = scmp.eq.s32.totalorder %s24, 1
      %p144 = por %p142, %p143
      %p145 = scmp.ne.s32.totalorder %s134, %s135
      %p146 = scmp.eq.s32.totalorder %s24, 0
      %p147 = por %p145, %p146
      %p148 = scmp.ne.s32.totalorder %s134, %s135
      %p149 = scmp.eq.s32.totalorder %s25, 1
      %p150 = por %p148, %p149
      %p152 = scmp.ne.s32.totalorder %s135, %s151
      %p153 = scmp.eq.s32.totalorder %s25, 0
      %p154 = por %p152, %p153
      %p155 = scmp.le.s32.totalorder 1, %s19
      %p156 = scmp.lt.s32.totalorder %s19, 3
      %p157 = pnand %p155, %p156
      %p158 = pneg %p157
      // Predicated region
      $region9: #{tpu_custom_call.1} parent=5 // pred_check
        _
      $region10: #{tpu_custom_call.1} parent=5 // pred_check_branch
        %160 = sbr.rel (%p157) target = $region12
      $region11: #{tpu_custom_call.1} parent=5 // pred_region
        %s161 = ssub.s32 %s19, 1
        // Predicated region
        $region13: #{tpu_custom_call.1} parent=11 // pred_check
          %p162 = pneg %p119
        $region14: #{tpu_custom_call.1} parent=11 // pred_check_branch
          %164 = sbr.rel (%p162) target = $region16
        $region15: #{tpu_custom_call.1} parent=11 // pred_region
          %s166 = ssub.s32 16, 16
          %167 = vsyncadd [#allocation5], %s166
          %s169 = sshll.u32 %s2, 4
          %s170 = int_to_ptr.vmem [resolvable:$true] %s169
          %172 = dma.vmem_to_smem %s170, 16, [#allocation8], [#allocation5]
        $region16: #{tpu_custom_call.1} parent=11 // pred_fallthru
          _
      $region12: #{tpu_custom_call.1} parent=5 // pred_fallthru
        _
      %p173 = scmp.lt.s32.totalorder %s19, 2
      // Predicated region
      $region17: #{tpu_custom_call.1} parent=5 // pred_check
        %p174 = pneg %p173
      $region18: #{tpu_custom_call.1} parent=5 // pred_check_branch
        %176 = sbr.rel (%p174) target = $region20
      $region19: #{tpu_custom_call.1} parent=5 // pred_region
        // Predicated region
        $region21: #{tpu_custom_call.1} parent=19 // pred_check
          %p177 = pneg %p62
        $region22: #{tpu_custom_call.1} parent=19 // pred_check_branch
          %179 = sbr.rel (%p177) target = $region24
        $region23: #{tpu_custom_call.1} parent=19 // pred_region
          %s180 = sand.u32 %s52, 1
          %s181 = scalar_lea.sflag [#allocation3], %s180
          %s182 = sand.u32 %s52, 1
          %s183 = smul.addr %s182, 8
          %s184 = scalar_lea.vmem [#allocation2], %s183
          %s185 = sadd.s32 %s27, %s28
          %s187 = ssub.s32 128, 128
          %188 = vsyncadd %s181, %s187
          %s189 = smul.addr %s26, 4
          %s190 = sadd.s32 %s185, %s189
          %s191 = smul.addr %s190, 32
          %s192 = scalar_lea.hbm %s0, %s191
          %s193 = sshll.u32 %s184, 4
          %s194 = int_to_ptr.vmem [resolvable:$true] %s193
          %199 = dma.hbm_to_vmem [thread:$0]  %s192, 128, %s194, %s181, 32, 32, 2
        $region24: #{tpu_custom_call.1} parent=19 // pred_fallthru
          _
        // Predicated region
        $region25: #{tpu_custom_call.1} parent=19 // pred_check
          %p200 = pneg %p92
        $region26: #{tpu_custom_call.1} parent=19 // pred_check_branch
          %202 = sbr.rel (%p200) target = $region28
        $region27: #{tpu_custom_call.1} parent=19 // pred_region
          %s203 = sand.u32 %s82, 1
          %s204 = scalar_lea.sflag [#allocation7], %s203
          %s205 = sand.u32 %s82, 1
          %s206 = smul.addr %s205, 2
          %s207 = scalar_lea.vmem [#allocation6], %s206
          %s208 = sadd.s32 %s27, %s28
          %s210 = ssub.s32 32, 32
          %211 = vsyncadd %s204, %s210
          %s212 = sadd.s32 %s208, %s26
          %s213 = smul.addr %s212, 32
          %s214 = scalar_lea.hbm %s1, %s213
          %s216 = sshll.u32 %s207, 4
          %s217 = int_to_ptr.vmem [resolvable:$true] %s216
          %219 = dma.hbm_to_vmem [thread:$0]  %s214, 32, %s217, %s204
        $region28: #{tpu_custom_call.1} parent=19 // pred_fallthru
          _
      $region20: #{tpu_custom_call.1} parent=5 // pred_fallthru
        _
      %p220 = scmp.le.s32.totalorder 1, %s19
      %p221 = scmp.lt.s32.totalorder %s19, 3
      %p222 = pnand %p220, %p221
      %p223 = pneg %p222
      // Predicated region
      $region29: #{tpu_custom_call.1} parent=5 // pred_check
        _
      $region30: #{tpu_custom_call.1} parent=5 // pred_check_branch
        %225 = sbr.rel (%p222) target = $region32
      $region31: #{tpu_custom_call.1} parent=5 // pred_region
        %s226 = ssub.s32 %s19, 1
        %s227 = sand.u32 %s55, 1
        %s228 = scalar_lea.sflag [#allocation3], %s227
        %s229 = sand.u32 %s55, 1
        %s230 = smul.addr %s229, 8
        %s231 = scalar_lea.vmem [#allocation2], %s230
        // Predicated region
        $region33: #{tpu_custom_call.1} parent=31 // pred_check
          %p232 = pneg %p68
        $region34: #{tpu_custom_call.1} parent=31 // pred_check_branch
          %234 = sbr.rel (%p232) target = $region36
        $region35: #{tpu_custom_call.1} parent=31 // pred_region
          %235 = dma.done %s228, 128
        $region36: #{tpu_custom_call.1} parent=31 // pred_fallthru
          _
        %s236 = sand.u32 %s85, 1
        %s237 = scalar_lea.sflag [#allocation7], %s236
        %s238 = sand.u32 %s85, 1
        %s239 = smul.addr %s238, 2
        %s240 = scalar_lea.vmem [#allocation6], %s239
        // Predicated region
        $region37: #{tpu_custom_call.1} parent=31 // pred_check
          %p241 = pneg %p98
        $region38: #{tpu_custom_call.1} parent=31 // pred_check_branch
          %243 = sbr.rel (%p241) target = $region40
        $region39: #{tpu_custom_call.1} parent=31 // pred_region
          %244 = dma.done %s237, 32
        $region40: #{tpu_custom_call.1} parent=31 // pred_fallthru
          _
        // Predicated region
        $region41: #{tpu_custom_call.1} parent=31 // pred_check
          %p245 = pneg %p119
        $region42: #{tpu_custom_call.1} parent=31 // pred_check_branch
          %247 = sbr.rel (%p245) target = $region44
        $region43: #{tpu_custom_call.1} parent=31 // pred_region
          %248 = dma.done [#allocation5], 16
        $region44: #{tpu_custom_call.1} parent=31 // pred_fallthru
          _
        %249 = sfence
        %s250 = sand.u32 %s55, 1
        %s251 = scalar_lea.sflag [#allocation3], %s250
        %s252 = sand.u32 %s55, 1
        %s253 = smul.addr %s252, 8
        %s254 = scalar_lea.vmem [#allocation2], %s253
        %p255 = pneg %p68
        %p256 = pneg %p65
        %s257 = sand.u32 %s85, 1
        %s258 = scalar_lea.sflag [#allocation7], %s257
        %s259 = sand.u32 %s85, 1
        %s260 = smul.addr %s259, 2
        %s261 = scalar_lea.vmem [#allocation6], %s260
        %p262 = pneg %p98
        %p263 = pneg %p95
        %p264 = pneg %p119
        %p265 = pneg %p116
        %p266 = pneg %p147
        %p267 = pneg %p144
        %s268 = sand.u32 %s134, 1
        %s269 = scalar_lea.sflag [#allocation4], %s268
        %s270 = sand.u32 %s134, 1
        %s271 = smul.addr %s270, 2
        %s272 = scalar_lea.vmem [#allocation9], %s271
        %s273 = sadd.s32 %s30, %s31
        %s274 = sadd.s32 %s30, %s31
        %p275 = scmp.eq.s32.totalorder %s31, 0
        // Predicated region
        $region45: #{tpu_custom_call.1} parent=31 // pred_check
          %p276 = pneg %p275
        $region46: #{tpu_custom_call.1} parent=31 // pred_check_branch
          %278 = sbr.rel (%p276) target = $region48
        $region47: #{tpu_custom_call.1} parent=31 // pred_region
          %279 = vst [vmem:[%s272] sm:$0x3] 0.0
        $region48: #{tpu_custom_call.1} parent=31 // pred_fallthru
          _
        %v280 = vld [vmem:[%s231] sm:$0x3]
        %s281 = scalar_lea.vmem %s231, 2 [#allocation2]
        %v282 = vld [vmem:[%s281] sm:$0x3]
        %s283 = scalar_lea.vmem %s231, 4 [#allocation2]
        %v284 = vld [vmem:[%s283] sm:$0x3]
        %s285 = scalar_lea.vmem %s231, 6 [#allocation2]
        %v286 = vld [vmem:[%s285] sm:$0x3]
        %v287 = vld [vmem:[%s240] sm:$0x3]
        %v288 = vmax.f32 %v280, %v282
        %v289 = vmax.f32 %v288, %v284
        %v290 = vmax.f32 %v289, %v286
        %v291 = vsub.f32 %v280, %v290
        %v292 = vmul.f32 %v291, 1.442695
        %v293 = vpow.pop %v292
        %v294 = vadd.f32 %v293, 0.0
        %vm295 = vcmp.eq.s32.totalorder %v287, 0
        %v296 = vsel %vm295, %v293, 0.0
        %s297 = sld [smem:[#allocation8]]
        %v298 = vstv %s297
        %v299 = vsel %vm295, %v298, 0.0
        %v300 = vsub.f32 %v282, %v290
        %v301 = vmul.f32 %v300, 1.442695
        %v302 = vpow.pop %v301
        %v303 = vadd.f32 %v294, %v302
        %vm304 = vcmp.eq.s32.totalorder %v287, 1
        %v305 = vsel %vm304, %v302, %v296
        %s306 = sld [smem:[#allocation8 + $0x1]]
        %v307 = vstv %s306
        %v308 = vsel %vm304, %v307, %v299
        %v309 = vsub.f32 %v284, %v290
        %v310 = vmul.f32 %v309, 1.442695
        %v311 = vpow.pop %v310
        %v312 = vadd.f32 %v303, %v311
        %vm313 = vcmp.eq.s32.totalorder %v287, 2
        %v314 = vsel %vm313, %v311, %v305
        %s315 = sld [smem:[#allocation8 + $0x2]]
        %v316 = vstv %s315
        %v317 = vsel %vm313, %v316, %v308
        %v318 = vsub.f32 %v286, %v290
        %v319 = vmul.f32 %v318, 1.442695
        %v320 = vpow.pop %v319
        %v321 = vadd.f32 %v312, %v320
        %vm322 = vcmp.eq.s32.totalorder %v287, 3
        %v323 = vsel %vm322, %v320, %v314
        %s324 = sld [smem:[#allocation8 + $0x3]]
        %v325 = vstv %s324
        %v326 = vsel %vm322, %v325, %v317
        %v327 = vrcp.pop %v321
        %v328 = vmul.f32 %v323, %v327
        %v329 = vadd.f32 %v328, 0.0001
        %v330 = vlog2.pop %v329
        %v331 = vmul.f32 %v330, 0.6931472
        %v332 = vsub.f32 1.0, %v329
        %v333 = vmul.f32 %v332, %v332
        %v334 = vsub.f32 0.0, %v326
        %v335 = vmul.f32 %v334, %v333
        %v336 = vmul.f32 %v335, %v331
        %v337 = vld [vmem:[%s272] sm:$0x3]
        %v338 = vadd.f32 %v337, %v336
        %339 = vst [vmem:[%s272] sm:$0x3] %v338
        %s340 = sand.u32 %s134, 1
        %s341 = scalar_lea.sflag [#allocation4], %s340
        %s342 = sand.u32 %s134, 1
        %s343 = smul.addr %s342, 2
        %s344 = scalar_lea.vmem [#allocation9], %s343
        // Predicated region
        $region49: #{tpu_custom_call.1} parent=31 // pred_check
          %p345 = pneg %p144
        $region50: #{tpu_custom_call.1} parent=31 // pred_check_branch
          %347 = sbr.rel (%p345) target = $region52
        $region51: #{tpu_custom_call.1} parent=31 // pred_region
          %s349 = ssub.s32 32, 32
          %350 = vsyncadd %s341, %s349
          %s351 = sadd.s32 %s30, %s29
          %s352 = smul.addr %s351, 32
          %s353 = scalar_lea.hbm %s3, %s352
          %s355 = sshll.u32 %s344, 4
          %s356 = int_to_ptr.vmem [resolvable:$true] %s355
          %358 = dma.vmem_to_hbm [thread:$0]  %s356, 32, %s353, %s341
        $region52: #{tpu_custom_call.1} parent=31 // pred_fallthru
          _
      $region32: #{tpu_custom_call.1} parent=5 // pred_fallthru
        _
      %p359 = scmp.le.s32.totalorder 2, %s19
      // Predicated region
      $region53: #{tpu_custom_call.1} parent=5 // pred_check
        %p360 = pneg %p359
      $region54: #{tpu_custom_call.1} parent=5 // pred_check_branch
        %362 = sbr.rel (%p360) target = $region56
      $region55: #{tpu_custom_call.1} parent=5 // pred_region
        %s363 = ssub.s32 %s19, 2
        // Predicated region
        $region57: #{tpu_custom_call.1} parent=55 // pred_check
          %p364 = pneg %p150
        $region58: #{tpu_custom_call.1} parent=55 // pred_check_branch
          %366 = sbr.rel (%p364) target = $region60
        $region59: #{tpu_custom_call.1} parent=55 // pred_region
          %s367 = sand.u32 %s135, 1
          %s368 = scalar_lea.sflag [#allocation4], %s367
          %s369 = sand.u32 %s135, 1
          %s370 = smul.addr %s369, 2
          %s371 = scalar_lea.vmem [#allocation9], %s370
          %372 = dma.done %s368, 32
        $region60: #{tpu_custom_call.1} parent=55 // pred_fallthru
          _
      $region56: #{tpu_custom_call.1} parent=5 // pred_fallthru
        _
    $region6: #{tpu_custom_call.1} parent=1 // loop_footer
      %s23 = sadd.s32 1, %s19
    $region7: #{tpu_custom_call.1} parent=1 // loop_footer_branch
      %18 = sbr.rel target = $region3
    $region8: #{tpu_custom_call.1} parent=1 // loop_exit
      _
    %373 = vsyncpa [#allocation3], 1
    %s374 = scalar_lea.sflag [#allocation3], 1
    %375 = vsyncpa %s374, 1
    %376 = vsyncpa [#allocation7], 1
    %s377 = scalar_lea.sflag [#allocation7], 1
    %378 = vsyncpa %s377, 1
    %379 = vsyncpa [#allocation4], 1
    %s380 = scalar_lea.sflag [#allocation4], 1
    %381 = vsyncpa %s380, 1
    %382 = vsyncpa [#allocation5], 1
    %s383 = scalar_lea.sflag [#allocation5], 1
    %384 = vsyncpa %s383, 1

</llo_original>
